<compile_context>
chip_gen: v5e
topology: v5e:2x2
jax: 0.10.0
libtpu: 0.0.40
codegen_flags: <defaults>
</compile_context>

<pallas_src>
import functools
import math

import jax
import jax.numpy as jnp
from jax import lax
from jax.experimental import pallas as pl
from jax.experimental.pallas import tpu as pltpu


_ONEHOT_MAX_VOCAB = 2048            # one-hot MXU path only for modest vocabs
_ONEHOT_BYTES_CAP = 2 * 1024 * 1024  # cap on the (T, vocab) one-hot temp


def _round_up(x, m):
    return (x + m - 1) // m * m


def _vmem_budget():
    """Per-generation VMEM sizing (v5e/v6e: 128 MiB, v7x: 64 MiB per core)."""
    cap = 64 * 1024 * 1024                      # conservative default (v7x)
    try:
        info = pltpu.get_tpu_info()
        cap = int(getattr(info, "vmem_capacity_bytes", cap))
    except Exception:
        pass
    limit = max(16 << 20, min((3 * cap) // 4, cap - (16 << 20)))
    slab_cap = (4 << 20) if cap <= (64 << 20) else (8 << 20)
    return cap, limit, slab_cap


# --------------------------------------------------------------------------- #
# Path A: table resident in VMEM, lookup as a one-hot matmul on the MXU.       #
# --------------------------------------------------------------------------- #
def _emb_onehot_kernel(ids_ref, lut_ref, out_ref, *, scale, vocab):
    # ids_ref: (T, 1) int32 token ids for this block (VMEM)
    # lut_ref: (vocab, n_features) table, resident in VMEM (constant block)
    # out_ref: (T, n_features)
    ids = ids_ref[...]                                  # (T, 1)
    t = ids.shape[0]
    iota = lax.broadcasted_iota(jnp.int32, (t, vocab), 1)
    onehot = (ids == iota).astype(lut_ref.dtype)        # exact 0.0 / 1.0
    rows = jnp.dot(onehot, lut_ref[...], preferred_element_type=jnp.float32)
    out_ref[...] = (rows * scale).astype(out_ref.dtype)


def _emb_onehot_call(flat_ids, lut, t, scale, vmem_limit):
    n_pad = flat_ids.shape[0]
    vocab, n_features = lut.shape
    kernel = functools.partial(_emb_onehot_kernel, scale=scale, vocab=vocab)
    return pl.pallas_call(
        kernel,
        out_shape=jax.ShapeDtypeStruct((n_pad, n_features), lut.dtype),
        grid=(n_pad // t,),
        in_specs=[
            pl.BlockSpec((t, 1), lambda i: (i, 0)),
            # Constant block index -> the table copy already in VMEM is reused
            # across grid steps (its 2x double-buffer is charged in the budget).
            pl.BlockSpec((vocab, n_features), lambda i: (0, 0)),
        ],
        out_specs=pl.BlockSpec((t, n_features), lambda i: (i, 0)),
        compiler_params=pltpu.CompilerParams(
            dimension_semantics=("parallel",),
            vmem_limit_bytes=vmem_limit,
        ),
    )(flat_ids.reshape(n_pad, 1), lut)


# --------------------------------------------------------------------------- #
# Path B: table resident in VMEM, 8-row (vreg-height) batched gather.          #
# --------------------------------------------------------------------------- #
def _emb_vmem_gather_kernel(ids_ref, lut_ref, out_ref, rows_ref, *,
                            scale, tokens_per_block):
    # ids_ref : (n_pad,) int32 in SMEM (scalar prefetch)
    # lut_ref : (vocab, n_features) resident in VMEM
    # out_ref : (T, n_features)
    # rows_ref: (8, n_features) staging tile (one vreg height)
    base = pl.program_id(0) * tokens_per_block

    @pl.loop(0, tokens_per_block // 8)
    def _(g):
        off = pl.multiple_of(g * 8, 8)
        for j in range(8):                               # static unroll
            tok = ids_ref[base + off + j]
            rows_ref[pl.ds(j, 1), :] = lut_ref[pl.ds(tok, 1), :]
        # One vectorized scale + (8, F) store per group (no per-token stores).
        out_ref[pl.ds(off, 8), :] = (
            rows_ref[...].astype(jnp.float32) * scale).astype(out_ref.dtype)


def _emb_vmem_gather_call(flat_ids, lut, t, scale, vmem_limit):
    n_pad = flat_ids.shape[0]
    vocab, n_features = lut.shape
    kernel = functools.partial(_emb_vmem_gather_kernel, scale=scale,
                               tokens_per_block=t)
    return pl.pallas_call(
        kernel,
        out_shape=jax.ShapeDtypeStruct((n_pad, n_features), lut.dtype),
        grid_spec=pltpu.PrefetchScalarGridSpec(
            num_scalar_prefetch=1,                       # flat ids -> SMEM
            grid=(n_pad // t,),
            in_specs=[pl.BlockSpec((vocab, n_features), lambda i, ids: (0, 0))],
            out_specs=pl.BlockSpec((t, n_features), lambda i, ids: (i, 0)),
            scratch_shapes=[pltpu.VMEM((8, n_features), lut.dtype)],
        ),
        compiler_params=pltpu.CompilerParams(
            dimension_semantics=("parallel",),
            vmem_limit_bytes=vmem_limit,
        ),
    )(flat_ids, lut)


# --------------------------------------------------------------------------- #
# Path C: table in HBM, 3-deep manually pipelined row-gather DMAs.             #
# --------------------------------------------------------------------------- #
def _emb_hbm_kernel(ids_ref, lut_hbm, out_ref, buf, sems, *,
                    scale, chunk, n_chunks, nbuf):
    # ids_ref: (n_pad,) int32 in SMEM (scalar prefetch)
    # lut_hbm: (vocab, n_features) raw HBM ref (memory_space=pl.ANY)
    # out_ref: (n_chunks*chunk, n_features) output super-block (VMEM)
    # buf    : (nbuf, chunk, n_features) VMEM gather ring
    # sems   : (nbuf,) DMA semaphores (one shared per buffer slot)
    base = pl.program_id(0) * (n_chunks * chunk)

    def issue(c):
        # Gather `chunk` rows into buf[c % nbuf].  Statically unrolled so the
        # scalar address math + descriptor pushes dual-issue (this path is
        # descriptor/latency bound, not HBM-bandwidth bound).
        slot = c % nbuf
        for t in range(chunk):
            tok = ids_ref[base + c * chunk + t]
            pltpu.make_async_copy(
                lut_hbm.at[tok], buf.at[slot, t], sems.at[slot]).start()

    # Prime the pipeline: up to nbuf-1 chunks in flight before consuming.
    for c0 in range(min(nbuf - 1, n_chunks)):
        issue(c0)

    @pl.loop(0, n_chunks)
    def _(c):
        slot = c % nbuf
        # Keep the pipeline nbuf-1 chunks deep.  The prefetch target slot is
        # always distinct from the slot consumed below (nbuf-1 != 0 mod nbuf),
        # and the target slot was fully consumed in the previous iteration.
        @pl.when(c + (nbuf - 1) < n_chunks)
        def _():
            issue(c + (nbuf - 1))
        # Single slab-sized wait: the `chunk` row DMAs each signalled
        # sems[slot] with row_bytes; one wait whose descriptor covers the whole
        # (chunk, n_features) buffer decrements the same byte total, avoiding
        # `chunk` serialized scalar waits per step.
        pltpu.make_async_copy(buf.at[slot], buf.at[slot], sems.at[slot]).wait()
        off = pl.multiple_of(c * chunk, 8)
        out_ref[pl.ds(off, chunk), :] = (
            buf[slot].astype(jnp.float32) * scale).astype(out_ref.dtype)


def _emb_hbm_call(flat_ids, lut, chunk, n_chunks, scale, vmem_limit, nbuf=3):
    n_pad = flat_ids.shape[0]
    vocab, n_features = lut.shape
    sblock = n_chunks * chunk
    kernel = functools.partial(_emb_hbm_kernel, scale=scale, chunk=chunk,
                               n_chunks=n_chunks, nbuf=nbuf)
    return pl.pallas_call(
        kernel,
        out_shape=jax.ShapeDtypeStruct((n_pad, n_features), lut.dtype),
        grid_spec=pltpu.PrefetchScalarGridSpec(
            num_scalar_prefetch=1,                       # flat ids -> SMEM
            grid=(n_pad // sblock,),
            in_specs=[pl.BlockSpec(memory_space=pl.ANY)],  # table stays in HBM
            out_specs=pl.BlockSpec((sblock, n_features), lambda i, ids: (i, 0)),
            scratch_shapes=[
                pltpu.VMEM((nbuf, chunk, n_features), lut.dtype),
                pltpu.SemaphoreType.DMA((nbuf,)),
            ],
        ),
        compiler_params=pltpu.CompilerParams(
            # Each grid step primes and drains its own DMAs, so this axis is
            # safe to run in parallel (splits across v7x's two TensorCores).
            dimension_semantics=("parallel",),
            vmem_limit_bytes=vmem_limit,
        ),
    )(flat_ids, lut)


# --------------------------------------------------------------------------- #
# Wrapper                                                                      #
# --------------------------------------------------------------------------- #
def _pad_ids(flat_ids, n_pad):
    n = flat_ids.shape[0]
    if n_pad != n:
        flat_ids = jnp.pad(flat_ids, (0, n_pad - n))     # padded tokens -> row 0
    return flat_ids


def embeddings_forward(x_ids, lut, *, force_path=None):
    """Pallas equivalent of Embeddings.forward: lut[x] * sqrt(n_features)."""
    batch, seq = x_ids.shape
    vocab, n_features = lut.shape
    scale = float(math.sqrt(n_features))
    itemsize = jnp.dtype(lut.dtype).itemsize

    # PyTorch nn.Embedding raises on out-of-range ids; here they are clamped.
    flat_ids = jnp.clip(x_ids.reshape(-1).astype(jnp.int32), 0, vocab - 1)
    n_tokens = flat_ids.shape[0]

    _, vmem_limit, slab_cap = _vmem_budget()
    table_bytes = vocab * n_features * itemsize
    row_bytes = n_features * itemsize

    def resident_fits(t, temp_bytes):
        # 2x table (input double-buffer) + 2x output block + temp + margin.
        need = 2 * table_bytes + 2 * t * row_bytes + temp_bytes + (2 << 20)
        return need <= vmem_limit

    # Keep the table resident only when that reads no more HBM than per-token
    # row gathers would (always allowed for small, <= 4 MiB tables).
    traffic_ok = table_bytes <= max(4 << 20, n_tokens * row_bytes)

    # Token-block size: sublane-dense, sized from the per-generation slab cap.
    t_max = max(8, min(slab_cap // max(1, row_bytes), 4096) // 8 * 8)
    t_max = min(t_max, _round_up(n_tokens, 8))

    # Path A sizing (also bounded by the (T, vocab) one-hot temp).
    t_a = min(t_max,
              max(8, (_ONEHOT_BYTES_CAP // max(1, vocab * itemsize)) // 8 * 8))
    can_onehot = (vocab <= _ONEHOT_MAX_VOCAB and traffic_ok
                  and resident_fits(t_a, t_a * vocab * itemsize))

    # Path B sizing.
    t_b = t_max
    can_gather = traffic_ok and resident_fits(t_b, 8 * row_bytes)

    if force_path is None:
        path = "onehot" if can_onehot else (
            "vmem_gather" if can_gather else "hbm")
    else:
        path = force_path

    if path == "onehot":
        n_pad = _round_up(n_tokens, t_a)
        out = _emb_onehot_call(_pad_ids(flat_ids, n_pad), lut, t_a, scale,
                               vmem_limit)
    elif path == "vmem_gather":
        n_pad = _round_up(n_tokens, t_b)
        out = _emb_vmem_gather_call(_pad_ids(flat_ids, n_pad), lut, t_b, scale,
                                    vmem_limit)
    elif path == "hbm":
        chunk = 8 if n_tokens <= 64 else 64
        n_chunks = max(1, min(4, pl.cdiv(n_tokens, chunk)))
        sblock = n_chunks * chunk
        n_pad = _round_up(n_tokens, sblock)
        out = _emb_hbm_call(_pad_ids(flat_ids, n_pad), lut, chunk, n_chunks,
                            scale, vmem_limit)
    else:
        raise ValueError(f"unknown path: {path}")

    return out[:n_tokens].reshape(batch, seq, n_features)


# --------------------------------------------------------------------------- #
# Self-test                                                                    #
# --------------------------------------------------------------------------- #
if __name__ == "__main__":
    def run_case(vocab, n_features, batch, seq, key):
        k_lut, k_ids = jax.random.split(key)
        lut = (jax.random.normal(k_lut, (vocab, n_features), dtype=jnp.float32)
               * 0.02)
        x_ids = jax.random.randint(k_ids, (batch, seq), 0, vocab,
                                   dtype=jnp.int32)
        ref = jnp.take(lut, x_ids, axis=0) * math.sqrt(n_features)
        for path in (None, "vmem_gather", "hbm"):   # None -> one-hot MXU path
            out = jax.block_until_ready(
                embeddings_forward(x_ids, lut, force_path=path))
            assert out.shape == (batch, seq, n_features)
            assert jnp.allclose(out, ref, atol=1e-5, rtol=1e-5), (
                f"mismatch: path={path} vocab={vocab} F={n_features}")

    key = jax.random.PRNGKey(0)
    k1, k2 = jax.random.split(key)
    # Small shape consistent with the module (batch=2, seq=8, hidden=32).
    run_case(vocab=64, n_features=32, batch=2, seq=8, key=k1)
    # Slightly larger shape: exercises multi-chunk HBM pipelining and padding.
    run_case(vocab=512, n_features=128, batch=4, seq=96, key=k2)

    print("KERNEL_OK")
</pallas_src>

<mosaic_0001>
module attributes {stable_mosaic.version = 11 : i64} {
  func.func @_emb_onehot_kernel(%arg0: i32, %arg1: memref<16x1xi32, #tpu.memory_space<vmem>>, %arg2: memref<64x32xf32, #tpu.memory_space<vmem>>, %arg3: memref<16x32xf32, #tpu.memory_space<vmem>>) attributes {dimension_semantics = [#tpu.dimension_semantics<parallel>], iteration_bounds = array<i64: 1>, scalar_prefetch = 0 : i64, scratch_operands = 0 : i64, tpu.core_type = #tpu.core_type<tc>, window_params = [{transform_indices = @transform_0, window_bounds = array<i64: 16, 1>}, {pipeline_mode = #tpu.pipeline_mode<synchronous>, transform_indices = @transform_1, window_bounds = array<i64: 64, 32>}, {transform_indices = @transform_2, window_bounds = array<i64: 16, 32>}]} {
    %c0 = arith.constant 0 : index
    %c0_0 = arith.constant 0 : index
    %0 = vector.load %arg1[%c0, %c0_0] : memref<16x1xi32, #tpu.memory_space<vmem>>, vector<16x1xi32>
    %1 = tpu.iota {dimensions = array<i32: 1>} : vector<16x64xi32>
    %2 = vector.broadcast %0 : vector<16x1xi32> to vector<16x64xi32>
    %3 = arith.cmpi eq, %2, %1 : vector<16x64xi32>
    %4 = arith.extui %3 : vector<16x64xi1> to vector<16x64xi32>
    %5 = arith.sitofp %4 : vector<16x64xi32> to vector<16x64xf32>
    %c0_1 = arith.constant 0 : index
    %c0_2 = arith.constant 0 : index
    %6 = vector.load %arg2[%c0_1, %c0_2] : memref<64x32xf32, #tpu.memory_space<vmem>>, vector<64x32xf32>
    %cst = arith.constant dense<0.000000e+00> : vector<16x32xf32>
    %7 = tpu.matmul %5, %6, %cst {dimension_numbers = #tpu.dot_dimension_numbers<[1], [0], [0], [1], [0, 0, 1, 1], [], []>} : vector<16x64xf32>, vector<64x32xf32>, vector<16x32xf32> -> vector<16x32xf32>
    %cst_3 = arith.constant 5.65685415 : f32
    %8 = vector.broadcast %cst_3 : f32 to vector<16x32xf32>
    %9 = arith.mulf %7, %8 : vector<16x32xf32>
    %c0_4 = arith.constant 0 : index
    %c0_5 = arith.constant 0 : index
    %10 = vector.load %arg3[%c0_4, %c0_5] : memref<16x32xf32, #tpu.memory_space<vmem>>, vector<16x32xf32>
    tpu.vector_store %arg3[%c0_4, %c0_5], %9 {strides = array<i32>} : memref<16x32xf32, #tpu.memory_space<vmem>>, vector<16x32xf32>,
    return
  }
  func.func @transform_0(%arg0: i32) -> (i32, i32) {
    %c0_i32 = arith.constant 0 : i32
    %c0_i32_0 = arith.constant 0 : i32
    return %arg0, %c0_i32 : i32, i32
  }
  func.func @transform_1(%arg0: i32) -> (i32, i32) {
    %c0_i32 = arith.constant 0 : i32
    %c0_i32_0 = arith.constant 0 : i32
    %c0_i32_1 = arith.constant 0 : i32
    return %c0_i32, %c0_i32_0 : i32, i32
  }
  func.func @transform_2(%arg0: i32) -> (i32, i32) {
    %c0_i32 = arith.constant 0 : i32
    %c0_i32_0 = arith.constant 0 : i32
    return %arg0, %c0_i32 : i32, i32
  }
}

</mosaic_0001>

<llo_original>
// kernel: tpu_custom_call.1
$region0: #{tpu_custom_call.1}
  #allocation0 [shape = 'u32[]', space=smem, size = 0x4, offset = 0x4, fixed_abs, tag = 'smem constant byte address 0x4 - core index']
  #allocation1 [shape = 'u32[72,128]{1,0:T(1,128)}', space=vmem, size = 0x9000, scoped, tag = 'internal scratch']
  %s0 = inlined_call_operand.vmem [shape: s32[16,1], index: 0, kind: input, shape index: {}]
  %s1 = inlined_call_operand.vmem [shape: f32[64,32], index: 1, kind: input, shape index: {}]
  %s2 = inlined_call_operand.hbm [shape: f32[16,32], index: 2, kind: output, shape index: {}]
  %s3 = sld [smem:[#allocation0]]
  $region18: #{tpu_custom_call.1} parent=0
    _
  %s5 = ssub.s32 1, %s3
  %s6 = scalar_select 0, %s5, %s3
  $region1: #{tpu_custom_call.1} parent=0
    #allocation2 [shape = 'u8[8192]{0}', space=vmem, size = 0x2000, scoped, tag = 'output window, operand 0, single buffered']
    #allocation3 [shape = 's32[1]{0}', space=sflag, size = 0x4, scoped, tag = 'scoped memory for tpu_custom_call.1']
    %7 = vsyncpa [#allocation3], 0
    // Predicated region
    $region2: #{tpu_custom_call.1} parent=1 // pred_check
      _
    $region3: #{tpu_custom_call.1} parent=1 // pred_check_branch
      %9 = sbr.rel (0) target = $region5
    $region4: #{tpu_custom_call.1} parent=1 // pred_region
      _
    $region5: #{tpu_custom_call.1} parent=1 // pred_fallthru
      _
    // Predicated region
    $region6: #{tpu_custom_call.1} parent=1 // pred_check
      _
    $region7: #{tpu_custom_call.1} parent=1 // pred_check_branch
      %11 = sbr.rel (0) target = $region9
    $region8: #{tpu_custom_call.1} parent=1 // pred_region
      _
    $region9: #{tpu_custom_call.1} parent=1 // pred_fallthru
      _
    %v12 = vld [vmem:[%s0] sm:$0xff]
    %v13 = vld [vmem:[%s0 + $0x8] sm:$0xff]
    %v14 = vlaneseq
    %v15 = vand.u32 %v14, 127
    %16 = vset.pattern.permute.xlu0 0
    %17 = vperm.xlu0 %16, %v12
    %v18 = vpop.permute.xlu0 %17
    %19 = vset.pattern.permute.xlu0 0
    %20 = vperm.xlu0 %19, %v13
    %v21 = vpop.permute.xlu0 %20
    %vm22 = vcmp.eq.s32.totalorder %v18, %v15
    %vm23 = vcmp.eq.s32.totalorder %v21, %v15
    %v24 = vsel %vm22, 1, 0
    %v25 = vsel %vm23, 1, 0
    %v26 = vcvt.s32.f32 %v24
    %v27 = vcvt.s32.f32 %v25
    %v28 = vld [vmem:[%s1] sm:$0xff]
    %v29 = vld [vmem:[%s1 + $0x8] sm:$0xff]
    %v30 = vld [vmem:[%s1 + $0x10] sm:$0xff]
    %v31 = vld [vmem:[%s1 + $0x18] sm:$0xff]
    %v32 = vld [vmem:[%s1 + $0x20] sm:$0xff]
    %v33 = vld [vmem:[%s1 + $0x28] sm:$0xff]
    %v34 = vld [vmem:[%s1 + $0x30] sm:$0xff]
    %v35 = vld [vmem:[%s1 + $0x38] sm:$0xff]
    %vm36 = vcmask 523264
    %v38 = vsel %vm36, %v26, 0
    %v41 = vsel %vm36, %v27, 0
    %43 = vmatpush.msra.mxu0 0.0
    %44 = vmatpush.msra.mxu0 0.0
    %45 = vmatpush.msra.mxu0 0.0
    %46 = vmatpush.msra.mxu0 0.0
    %47 = vmatpush.msra.mxu0 0.0
    %48 = vmatpush.msra.mxu0 0.0
    %49 = vmatpush.msra.mxu0 0.0
    %50 = vmatpush.msra.mxu0 0.0
    %51 = vmatpush.msra.mxu0 %v35
    %52 = vmatpush.msra.mxu0 %v34
    %53 = vmatpush.msra.mxu0 %v33
    %54 = vmatpush.msra.mxu0 %v32
    %55 = vmatpush.msra.mxu0 %v31
    %56 = vmatpush.msra.mxu0 %v30
    %57 = vmatpush.msra.mxu0 %v29
    %58 = vmatpush.msra.mxu0 %v28
    %59 = vmatmul.f32.gmra.mxu0 %v38
    %v60 = vpop.f32.mrf.mxu0
    %v61 = vadd.f32 0.0, %v60
    %62 = vmatmul.f32.gmra.mxu0 %v41
    %v63 = vpop.f32.mrf.mxu0
    %v64 = vadd.f32 0.0, %v63
    %65 = vdwg.mxu0
    %v66 = vmul.f32 %v61, 5.656854
    %v67 = vmul.f32 %v64, 5.656854
    %vm68 = vcmask 261120
    %69 = vst.msk [vmem:[#allocation2] sm:$0xff] %vm68, %v66
    %70 = vst.msk [vmem:[#allocation2 + $0x8] sm:$0xff] %vm68, %v67
    // Predicated region
    $region10: #{tpu_custom_call.1} parent=1 // pred_check
      _
    $region11: #{tpu_custom_call.1} parent=1 // pred_check_branch
      %72 = sbr.rel (0) target = $region13
    $region12: #{tpu_custom_call.1} parent=1 // pred_region
      %74 = vsyncadd [#allocation3], 0
      %s75 = sshll.u32 [#allocation2], 4
      %s76 = int_to_ptr.vmem [resolvable:$true] %s75
      %s77 = sshll.u32 %s2, 4
      %s78 = int_to_ptr.hbm [resolvable:$true] %s77
      %83 = dma.vmem_to_hbm [thread:$0]  %s76, 256, %s78, [#allocation3], 128, 128, 8
    $region13: #{tpu_custom_call.1} parent=1 // pred_fallthru
      _
    // Predicated region
    $region14: #{tpu_custom_call.1} parent=1 // pred_check
      _
    $region15: #{tpu_custom_call.1} parent=1 // pred_check_branch
      %85 = sbr.rel (0) target = $region17
    $region16: #{tpu_custom_call.1} parent=1 // pred_region
      %87 = dma.done [#allocation3], 256
    $region17: #{tpu_custom_call.1} parent=1 // pred_fallthru
      _
    %88 = vsyncpa [#allocation3], 1

</llo_original>
